<compile_context>
chip_gen: v7x
topology: tpu7x:2x2x1
jax: 0.10.0
libtpu: 0.0.40
codegen_flags: <defaults>
</compile_context>

<pallas_src>
import math

import jax
import jax.numpy as jnp
from jax.experimental import pallas as pl
from jax.experimental.pallas import tpu as pltpu


# ----------------------------------------------------------------------------
# Fused-table layout (column -> table mapping of the PyTorch forward:
# x[:, :, 3]=weekday, 2=day, 1=month, 0=year).
# ----------------------------------------------------------------------------
_WEEKDAY_SIZE = 7
_DAY_SIZE = 32
_MONTH_SIZE = 13
_YEAR_SIZE = 10

_OFF_WK = 0
_OFF_DAY = _OFF_WK + _WEEKDAY_SIZE        # 7
_OFF_MON = _OFF_DAY + _DAY_SIZE           # 39
_OFF_YR = _OFF_MON + _MONTH_SIZE          # 52
_K_TOTAL = _OFF_YR + _YEAR_SIZE           # 62
_K_PAD = 64                               # fused-table rows padded to 64


def _round_up(v: int, m: int) -> int:
    return ((v + m - 1) // m) * m


def _fixed_embedding_table(c_in: int, d_model: int) -> jnp.ndarray:
    """Deterministic sinusoidal table, identical to FixedEmbedding.__init__."""
    position = jnp.arange(c_in, dtype=jnp.float32)[:, None]               # (c_in, 1)
    div_term = jnp.exp(
        jnp.arange(0, d_model, 2, dtype=jnp.float32)
        * -(math.log(10000.0) / d_model)
    )                                                                      # (d_model//2,)
    w = jnp.zeros((c_in, d_model), dtype=jnp.float32)
    w = w.at[:, 0::2].set(jnp.sin(position * div_term))
    w = w.at[:, 1::2].set(jnp.cos(position * div_term))
    return w


def _temporal_embedding_kernel(x_ref, tbl_ref, o_ref):
    x = x_ref[...]                          # (tile_n, 4) int32
    tile_n = x.shape[0]
    k = tbl_ref.shape[0]                    # _K_PAD == 64

    # One shared iota over the fused-table row axis (lanes).
    iota = jax.lax.broadcasted_iota(jnp.int32, (tile_n, k), 1)

    # Clamp (jnp.take clip semantics; also guards zero-padded tail rows), then
    # add each sub-table's row offset inside the fused table.
    wk = jnp.clip(x[:, 3:4], 0, _WEEKDAY_SIZE - 1) + _OFF_WK
    dy = jnp.clip(x[:, 2:3], 0, _DAY_SIZE - 1) + _OFF_DAY
    mo = jnp.clip(x[:, 1:2], 0, _MONTH_SIZE - 1) + _OFF_MON
    yr = jnp.clip(x[:, 0:1], 0, _YEAR_SIZE - 1) + _OFF_YR

    # Multi-hot via boolean OR (column ranges are disjoint -> OR == sum).
    # Cast to the table dtype so a bf16 table gives a native-bf16 MXU matmul.
    onehot = ((iota == wk) | (iota == dy) | (iota == mo) | (iota == yr)).astype(
        tbl_ref.dtype
    )
    res = jnp.dot(onehot, tbl_ref[...], preferred_element_type=jnp.float32)
    o_ref[...] = res.astype(o_ref.dtype)


def temporal_embedding(
    x,
    wk_tbl,
    day_tbl,
    mon_tbl,
    yr_tbl,
    *,
    tile_n=None,
    out_dtype=jnp.float32,
    bf16_matmul=False,
):
    """x: [B, S, >=4] integer marks -> [B, S, d_model] in `out_dtype`.

    out_dtype=jnp.bfloat16 halves HBM write traffic (the kernel is write-bound
    on v5e/v6e); bf16_matmul=True additionally runs the one-hot matmul with
    bf16 inputs (native MXU path on v7x).  Both default to off for exactness.
    """
    b, s = x.shape[0], x.shape[1]
    d_model = wk_tbl.shape[1]
    n = b * s
    out_dtype = jnp.dtype(out_dtype)
    tbl_dtype = jnp.bfloat16 if bf16_matmul else jnp.float32

    # Fused table [64, d_model]: weekday | day | month | year | zero-pad rows.
    fused = jnp.concatenate(
        [wk_tbl, day_tbl, mon_tbl, yr_tbl], axis=0
    ).astype(jnp.float32)
    fused = jnp.pad(fused, ((0, _K_PAD - _K_TOTAL), (0, 0))).astype(tbl_dtype)

    x_flat = x[..., :4].reshape(n, 4).astype(jnp.int32)

    # ---- Row-tile selection ------------------------------------------------
    # sublane alignment: 8 for 32-bit output, 16 for packed bf16 output.
    row_align = 16 if out_dtype.itemsize < 4 else 8
    if tile_n is None:
        # ~8 MiB output block target, hard cap 8192 rows (bounds the lane-padded
        # (tile_n, 128) index buffer and the (tile_n, 64) one-hot intermediate).
        tile_n = (8 * 1024 * 1024) // max(1, d_model * out_dtype.itemsize)
        tile_n = min(tile_n, 8192)
    # Keep >= 4 grid steps when enough rows exist (pipeline depth; on v7x the
    # "parallel" axis shards across the two TensorCores).
    if n >= 4 * row_align:
        tile_n = min(tile_n, _round_up(pl.cdiv(n, 4), row_align))
    tile_n = _round_up(max(int(tile_n), row_align), row_align)
    tile_n = min(tile_n, _round_up(n, row_align))

    # Avoid the post-kernel out[:n] slice (an extra full HBM pass on a
    # write-bound kernel): prefer a nearby tile size that divides n exactly.
    if n % tile_n != 0:
        t = (tile_n // row_align) * row_align
        while t >= max(row_align, tile_n // 2):
            if n % t == 0:
                tile_n = t
                break
            t -= row_align

    n_pad = pl.cdiv(n, tile_n) * tile_n
    if n_pad != n:
        # Padded rows read index 0 (clamped in-kernel anyway) and are sliced off.
        x_flat = jnp.pad(x_flat, ((0, n_pad - n), (0, 0)))

    # ---- VMEM budget (double-buffered blocks + intermediates + headroom) ----
    d_lanes = _round_up(d_model, 128)
    in_block_bytes = tile_n * 128 * 4                    # (tile_n,4) i32, lane-padded
    out_block_bytes = tile_n * d_lanes * out_dtype.itemsize
    tbl_block_bytes = _K_PAD * d_lanes * jnp.dtype(tbl_dtype).itemsize
    scratch_bytes = tile_n * _K_PAD * 4 * 2              # one-hot + f32 dot result
    vmem_limit = (
        2 * (in_block_bytes + out_block_bytes + tbl_block_bytes)
        + scratch_bytes
        + (4 << 20)                                      # headroom
    )
    vmem_limit = int(min(max(vmem_limit, 32 << 20), 64 << 20))  # v7x phys = 64 MiB

    out = pl.pallas_call(
        _temporal_embedding_kernel,
        out_shape=jax.ShapeDtypeStruct((n_pad, d_model), out_dtype),
        grid_spec=pltpu.PrefetchScalarGridSpec(
            num_scalar_prefetch=0,
            grid=(n_pad // tile_n,),
            in_specs=[
                pl.BlockSpec((tile_n, 4), lambda i: (i, 0)),        # time marks
                pl.BlockSpec((_K_PAD, d_model), lambda i: (0, 0)),  # fused table (resident)
            ],
            out_specs=pl.BlockSpec((tile_n, d_model), lambda i: (i, 0)),
        ),
        compiler_params=pltpu.CompilerParams(
            dimension_semantics=("parallel",),
            vmem_limit_bytes=vmem_limit,
        ),
    )(x_flat, fused)

    if n_pad != n:
        out = out[:n]
    return out.reshape(b, s, d_model)


def temporal_embedding_ref(x, wk_tbl, day_tbl, mon_tbl, yr_tbl):
    """Pure-JAX reference matching the PyTorch forward."""
    xl = x.astype(jnp.int32)
    return (
        jnp.take(wk_tbl, xl[:, :, 3], axis=0)
        + jnp.take(day_tbl, xl[:, :, 2], axis=0)
        + jnp.take(mon_tbl, xl[:, :, 1], axis=0)
        + jnp.take(yr_tbl, xl[:, :, 0], axis=0)
    )


def _make_marks(key, b, s):
    k0, k1, k2, k3 = jax.random.split(key, 4)
    return jnp.stack(
        [
            jax.random.randint(k0, (b, s), 0, _YEAR_SIZE),     # year index
            jax.random.randint(k1, (b, s), 0, _MONTH_SIZE),    # month index
            jax.random.randint(k2, (b, s), 0, _DAY_SIZE),      # day index
            jax.random.randint(k3, (b, s), 0, _WEEKDAY_SIZE),  # weekday index
        ],
        axis=-1,
    ).astype(jnp.int32)                                        # [B, S, 4]


if __name__ == "__main__":
    d_model = 32

    # Fixed (non-trainable) sinusoidal tables, as in FixedEmbedding.__init__.
    wk_tbl = _fixed_embedding_table(_WEEKDAY_SIZE, d_model)
    day_tbl = _fixed_embedding_table(_DAY_SIZE, d_model)
    mon_tbl = _fixed_embedding_table(_MONTH_SIZE, d_model)
    yr_tbl = _fixed_embedding_table(_YEAR_SIZE, d_model)

    key = jax.random.PRNGKey(0)
    k_a, k_b = jax.random.split(key)

    # 1) Small, exact fp32 path (single tile).
    B, S = 2, 8
    x = _make_marks(k_a, B, S)
    out = jax.block_until_ready(
        temporal_embedding(x, wk_tbl, day_tbl, mon_tbl, yr_tbl)
    )
    ref = temporal_embedding_ref(x, wk_tbl, day_tbl, mon_tbl, yr_tbl)
    assert out.shape == (B, S, d_model)
    assert jnp.allclose(out, ref, atol=1e-5, rtol=1e-5)

    # 2) Multi-tile + padded-tail path (n=300 not a multiple of tile_n=64).
    B2, S2 = 3, 100
    x2 = _make_marks(k_b, B2, S2)
    out2 = jax.block_until_ready(
        temporal_embedding(x2, wk_tbl, day_tbl, mon_tbl, yr_tbl, tile_n=64)
    )
    ref2 = temporal_embedding_ref(x2, wk_tbl, day_tbl, mon_tbl, yr_tbl)
    assert out2.shape == (B2, S2, d_model)
    assert jnp.allclose(out2, ref2, atol=1e-5, rtol=1e-5)

    # 3) bf16 output + bf16 matmul fast path (v7x-oriented), loose tolerance.
    out3 = jax.block_until_ready(
        temporal_embedding(
            x, wk_tbl, day_tbl, mon_tbl, yr_tbl,
            out_dtype=jnp.bfloat16, bf16_matmul=True,
        )
    )
    assert out3.dtype == jnp.bfloat16
    assert jnp.allclose(out3.astype(jnp.float32), ref, atol=6e-2, rtol=6e-2)

    print("KERNEL_OK")
</pallas_src>

<mosaic_0001>
module attributes {stable_mosaic.version = 11 : i64} {
  func.func @_temporal_embedding_kernel(%arg0: i32, %arg1: memref<16x4xi32, #tpu.memory_space<vmem>>, %arg2: memref<64x32xf32, #tpu.memory_space<vmem>>, %arg3: memref<16x32xf32, #tpu.memory_space<vmem>>) attributes {dimension_semantics = [#tpu.dimension_semantics<parallel>], iteration_bounds = array<i64: 1>, scalar_prefetch = 0 : i64, scratch_operands = 0 : i64, tpu.core_type = #tpu.core_type<tc>, window_params = [{transform_indices = @transform_0, window_bounds = array<i64: 16, 4>}, {pipeline_mode = #tpu.pipeline_mode<synchronous>, transform_indices = @transform_1, window_bounds = array<i64: 64, 32>}, {transform_indices = @transform_2, window_bounds = array<i64: 16, 32>}]} {
    %c0 = arith.constant 0 : index
    %c0_0 = arith.constant 0 : index
    %0 = vector.load %arg1[%c0, %c0_0] : memref<16x4xi32, #tpu.memory_space<vmem>>, vector<16x4xi32>
    %1 = tpu.iota {dimensions = array<i32: 1>} : vector<16x64xi32>
    %2 = vector.extract_strided_slice %0 {offsets = [0, 3], sizes = [16, 1], strides = [1, 1]} : vector<16x4xi32> to vector<16x1xi32>
    %c0_i32 = arith.constant 0 : i32
    %c6_i32 = arith.constant 6 : i32
    %3 = vector.broadcast %c0_i32 : i32 to vector<16x1xi32>
    %4 = arith.maxsi %3, %2 : vector<16x1xi32>
    %5 = vector.broadcast %c6_i32 : i32 to vector<16x1xi32>
    %6 = arith.minsi %5, %4 : vector<16x1xi32>
    %c0_i32_1 = arith.constant 0 : i32
    %7 = vector.broadcast %c0_i32_1 : i32 to vector<16x1xi32>
    %8 = arith.addi %6, %7 : vector<16x1xi32>
    %9 = vector.extract_strided_slice %0 {offsets = [0, 2], sizes = [16, 1], strides = [1, 1]} : vector<16x4xi32> to vector<16x1xi32>
    %c0_i32_2 = arith.constant 0 : i32
    %c31_i32 = arith.constant 31 : i32
    %10 = vector.broadcast %c0_i32_2 : i32 to vector<16x1xi32>
    %11 = arith.maxsi %10, %9 : vector<16x1xi32>
    %12 = vector.broadcast %c31_i32 : i32 to vector<16x1xi32>
    %13 = arith.minsi %12, %11 : vector<16x1xi32>
    %c7_i32 = arith.constant 7 : i32
    %14 = vector.broadcast %c7_i32 : i32 to vector<16x1xi32>
    %15 = arith.addi %13, %14 : vector<16x1xi32>
    %16 = vector.extract_strided_slice %0 {offsets = [0, 1], sizes = [16, 1], strides = [1, 1]} : vector<16x4xi32> to vector<16x1xi32>
    %c0_i32_3 = arith.constant 0 : i32
    %c12_i32 = arith.constant 12 : i32
    %17 = vector.broadcast %c0_i32_3 : i32 to vector<16x1xi32>
    %18 = arith.maxsi %17, %16 : vector<16x1xi32>
    %19 = vector.broadcast %c12_i32 : i32 to vector<16x1xi32>
    %20 = arith.minsi %19, %18 : vector<16x1xi32>
    %c39_i32 = arith.constant 39 : i32
    %21 = vector.broadcast %c39_i32 : i32 to vector<16x1xi32>
    %22 = arith.addi %20, %21 : vector<16x1xi32>
    %23 = vector.extract_strided_slice %0 {offsets = [0, 0], sizes = [16, 1], strides = [1, 1]} : vector<16x4xi32> to vector<16x1xi32>
    %c0_i32_4 = arith.constant 0 : i32
    %c9_i32 = arith.constant 9 : i32
    %24 = vector.broadcast %c0_i32_4 : i32 to vector<16x1xi32>
    %25 = arith.maxsi %24, %23 : vector<16x1xi32>
    %26 = vector.broadcast %c9_i32 : i32 to vector<16x1xi32>
    %27 = arith.minsi %26, %25 : vector<16x1xi32>
    %c52_i32 = arith.constant 52 : i32
    %28 = vector.broadcast %c52_i32 : i32 to vector<16x1xi32>
    %29 = arith.addi %27, %28 : vector<16x1xi32>
    %30 = vector.broadcast %8 : vector<16x1xi32> to vector<16x64xi32>
    %31 = arith.cmpi eq, %1, %30 : vector<16x64xi32>
    %32 = vector.broadcast %15 : vector<16x1xi32> to vector<16x64xi32>
    %33 = arith.cmpi eq, %1, %32 : vector<16x64xi32>
    %34 = arith.ori %31, %33 : vector<16x64xi1>
    %35 = vector.broadcast %22 : vector<16x1xi32> to vector<16x64xi32>
    %36 = arith.cmpi eq, %1, %35 : vector<16x64xi32>
    %37 = arith.ori %34, %36 : vector<16x64xi1>
    %38 = vector.broadcast %29 : vector<16x1xi32> to vector<16x64xi32>
    %39 = arith.cmpi eq, %1, %38 : vector<16x64xi32>
    %40 = arith.ori %37, %39 : vector<16x64xi1>
    %41 = arith.extui %40 : vector<16x64xi1> to vector<16x64xi32>
    %42 = arith.sitofp %41 : vector<16x64xi32> to vector<16x64xf32>
    %c0_5 = arith.constant 0 : index
    %c0_6 = arith.constant 0 : index
    %43 = vector.load %arg2[%c0_5, %c0_6] : memref<64x32xf32, #tpu.memory_space<vmem>>, vector<64x32xf32>
    %cst = arith.constant dense<0.000000e+00> : vector<16x32xf32>
    %44 = tpu.matmul %42, %43, %cst {dimension_numbers = #tpu.dot_dimension_numbers<[1], [0], [0], [1], [0, 0, 1, 1], [], []>} : vector<16x64xf32>, vector<64x32xf32>, vector<16x32xf32> -> vector<16x32xf32>
    %c0_7 = arith.constant 0 : index
    %c0_8 = arith.constant 0 : index
    %45 = vector.load %arg3[%c0_7, %c0_8] : memref<16x32xf32, #tpu.memory_space<vmem>>, vector<16x32xf32>
    tpu.vector_store %arg3[%c0_7, %c0_8], %44 {strides = array<i32>} : memref<16x32xf32, #tpu.memory_space<vmem>>, vector<16x32xf32>,
    return
  }
  func.func @transform_0(%arg0: i32) -> (i32, i32) {
    %c0_i32 = arith.constant 0 : i32
    %c0_i32_0 = arith.constant 0 : i32
    return %arg0, %c0_i32 : i32, i32
  }
  func.func @transform_1(%arg0: i32) -> (i32, i32) {
    %c0_i32 = arith.constant 0 : i32
    %c0_i32_0 = arith.constant 0 : i32
    %c0_i32_1 = arith.constant 0 : i32
    return %c0_i32, %c0_i32_0 : i32, i32
  }
  func.func @transform_2(%arg0: i32) -> (i32, i32) {
    %c0_i32 = arith.constant 0 : i32
    %c0_i32_0 = arith.constant 0 : i32
    return %arg0, %c0_i32 : i32, i32
  }
}

</mosaic_0001>

<llo_original>
// kernel: tpu_custom_call.1
$region0: #{tpu_custom_call.1}
  #allocation0 [shape = 'u32[]', space=smem, size = 0x4, offset = 0x4, fixed_abs, tag = 'smem constant byte address 0x4 - core index']
  #allocation1 [shape = 'u32[144,128]{1,0:T(1,128)}', space=vmem, size = 0x12000, scoped, tag = 'internal scratch']
  %s0 = inlined_call_operand.vmem [shape: s32[16,4], index: 0, kind: input, shape index: {}]
  %s1 = inlined_call_operand.vmem [shape: f32[64,32], index: 1, kind: input, shape index: {}]
  %s2 = inlined_call_operand.hbm [shape: f32[16,32], index: 2, kind: output, shape index: {}]
  %s3 = sld [smem:[#allocation0]]
  $region18: #{tpu_custom_call.1} parent=0
    _
  %s5 = ssub.s32 1, %s3
  %s6 = scalar_select 0, %s5, %s3
  $region1: #{tpu_custom_call.1} parent=0
    #allocation2 [shape = 'u8[8192]{0}', space=vmem, size = 0x2000, scoped, tag = 'output window, operand 0, single buffered']
    #allocation3 [shape = 's32[1]{0}', space=sflag, size = 0x4, scoped, tag = 'scoped memory for tpu_custom_call.1']
    %7 = vsyncpa [#allocation3], 0
    // Predicated region
    $region2: #{tpu_custom_call.1} parent=1 // pred_check
      _
    $region3: #{tpu_custom_call.1} parent=1 // pred_check_branch
      %9 = sbr.rel (0) target = $region5
    $region4: #{tpu_custom_call.1} parent=1 // pred_region
      _
    $region5: #{tpu_custom_call.1} parent=1 // pred_fallthru
      _
    // Predicated region
    $region6: #{tpu_custom_call.1} parent=1 // pred_check
      _
    $region7: #{tpu_custom_call.1} parent=1 // pred_check_branch
      %11 = sbr.rel (0) target = $region9
    $region8: #{tpu_custom_call.1} parent=1 // pred_region
      _
    $region9: #{tpu_custom_call.1} parent=1 // pred_fallthru
      _
    %v12 = vld [vmem:[%s0] sm:$0xff]
    %v13 = vld [vmem:[%s0 + $0x8] sm:$0xff]
    %v14 = vlaneseq
    %v15 = vand.u32 %v14, 127
    %vm16 = vcmp.gt.s32.totalorder %v12, 0
    %v17 = vsel %vm16, %v12, 0
    %vm18 = vcmp.gt.s32.totalorder %v13, 0
    %v19 = vsel %vm18, %v13, 0
    %vm20 = vcmp.lt.s32.totalorder %v17, 6
    %v21 = vsel %vm20, %v17, 6
    %vm22 = vcmp.lt.s32.totalorder %v19, 6
    %v23 = vsel %vm22, %v19, 6
    %vm24 = vcmp.lt.s32.totalorder %v17, 31
    %v25 = vsel %vm24, %v17, 31
    %vm26 = vcmp.lt.s32.totalorder %v19, 31
    %v27 = vsel %vm26, %v19, 31
    %v28 = vadd.s32 %v25, 7
    %v29 = vadd.s32 %v27, 7
    %vm30 = vcmp.lt.s32.totalorder %v17, 12
    %v31 = vsel %vm30, %v17, 12
    %vm32 = vcmp.lt.s32.totalorder %v19, 12
    %v33 = vsel %vm32, %v19, 12
    %v34 = vadd.s32 %v31, 39
    %v35 = vadd.s32 %v33, 39
    %vm36 = vcmp.lt.s32.totalorder %v17, 9
    %v37 = vsel %vm36, %v17, 9
    %vm38 = vcmp.lt.s32.totalorder %v19, 9
    %v39 = vsel %vm38, %v19, 9
    %v40 = vadd.s32 %v37, 52
    %v41 = vadd.s32 %v39, 52
    %42 = vset.pattern.permute.xlu0 3
    %43 = vperm.xlu0 %42, %v21
    %v44 = vpop.permute.xlu0 %43
    %45 = vset.pattern.permute.xlu0 3
    %46 = vperm.xlu0 %45, %v23
    %v47 = vpop.permute.xlu0 %46
    %vm48 = vcmp.eq.s32.totalorder %v15, %v44
    %vm49 = vcmp.eq.s32.totalorder %v15, %v47
    %50 = vset.pattern.permute.xlu0 2
    %51 = vperm.xlu0 %50, %v28
    %v52 = vpop.permute.xlu0 %51
    %53 = vset.pattern.permute.xlu0 2
    %54 = vperm.xlu0 %53, %v29
    %v55 = vpop.permute.xlu0 %54
    %vm56 = vcmp.eq.s32.totalorder %v15, %v52
    %vm57 = vcmp.eq.s32.totalorder %v15, %v55
    %vm58 = vmor %vm48, %vm56
    %vm59 = vmor %vm49, %vm57
    %60 = vset.pattern.permute.xlu0 1
    %61 = vperm.xlu0 %60, %v34
    %v62 = vpop.permute.xlu0 %61
    %63 = vset.pattern.permute.xlu0 1
    %64 = vperm.xlu0 %63, %v35
    %v65 = vpop.permute.xlu0 %64
    %vm66 = vcmp.eq.s32.totalorder %v15, %v62
    %vm67 = vcmp.eq.s32.totalorder %v15, %v65
    %vm68 = vmor %vm58, %vm66
    %vm69 = vmor %vm59, %vm67
    %70 = vset.pattern.permute.xlu0 0
    %71 = vperm.xlu0 %70, %v40
    %v72 = vpop.permute.xlu0 %71
    %73 = vset.pattern.permute.xlu0 0
    %74 = vperm.xlu0 %73, %v41
    %v75 = vpop.permute.xlu0 %74
    %vm76 = vcmp.eq.s32.totalorder %v15, %v72
    %vm77 = vcmp.eq.s32.totalorder %v15, %v75
    %vm78 = vmor %vm68, %vm76
    %vm79 = vmor %vm69, %vm77
    %v80 = vsel %vm78, 1, 0
    %v81 = vsel %vm79, 1, 0
    %v82 = vcvt.s32.f32 %v80
    %v83 = vcvt.s32.f32 %v81
    %v84 = vld [vmem:[%s1] sm:$0xff]
    %v85 = vld [vmem:[%s1 + $0x8] sm:$0xff]
    %v86 = vld [vmem:[%s1 + $0x10] sm:$0xff]
    %v87 = vld [vmem:[%s1 + $0x18] sm:$0xff]
    %v88 = vld [vmem:[%s1 + $0x20] sm:$0xff]
    %v89 = vld [vmem:[%s1 + $0x28] sm:$0xff]
    %v90 = vld [vmem:[%s1 + $0x30] sm:$0xff]
    %v91 = vld [vmem:[%s1 + $0x38] sm:$0xff]
    %vm92 = vcmask 523264
    %v94 = vsel %vm92, %v82, 0
    %v97 = vsel %vm92, %v83, 0
    %99 = vmatprep.subr.mxu0 0.0
    %100 = vmatpush1.msra.mxu0 %v84
    %101 = vmatprep.subr.mxu0 0.0
    %102 = vmatpush1.msra.mxu0 %v85
    %103 = vmatprep.subr.mxu0 0.0
    %104 = vmatpush1.msra.mxu0 %v86
    %105 = vmatprep.subr.mxu0 0.0
    %106 = vmatpush1.msra.mxu0 %v87
    %107 = vmatprep.subr.mxu0 0.0
    %108 = vmatpush1.msra.mxu0 %v88
    %109 = vmatprep.subr.mxu0 0.0
    %110 = vmatpush1.msra.mxu0 %v89
    %111 = vmatprep.subr.mxu0 0.0
    %112 = vmatpush1.msra.mxu0 %v90
    %113 = vmatprep.subr.mxu0 0.0
    %114 = vmatpush1.msra.mxu0 %v91
    %115 = vmatprep.subr.mxu0 0.0
    %116 = vmatpush1.msra.mxu0 0.0
    %117 = vmatprep.subr.mxu0 0.0
    %118 = vmatpush1.msra.mxu0 0.0
    %119 = vmatprep.subr.mxu0 0.0
    %120 = vmatpush1.msra.mxu0 0.0
    %121 = vmatprep.subr.mxu0 0.0
    %122 = vmatpush1.msra.mxu0 0.0
    %123 = vmatprep.subr.mxu0 0.0
    %124 = vmatpush1.msra.mxu0 0.0
    %125 = vmatprep.subr.mxu0 0.0
    %126 = vmatpush1.msra.mxu0 0.0
    %127 = vmatprep.subr.mxu0 0.0
    %128 = vmatpush1.msra.mxu0 0.0
    %129 = vmatprep.subr.mxu0 0.0
    %130 = vmatpush1.msra.mxu0 0.0
    %131 = vmatprep.subr.mxu0 0.0
    %132 = vmatpush1.msra.mxu0 0.0
    %133 = vmatprep.subr.mxu0 0.0
    %134 = vmatpush1.msra.mxu0 0.0
    %135 = vmatprep.subr.mxu0 0.0
    %136 = vmatpush1.msra.mxu0 0.0
    %137 = vmatprep.subr.mxu0 0.0
    %138 = vmatpush1.msra.mxu0 0.0
    %139 = vmatprep.subr.mxu0 0.0
    %140 = vmatpush1.msra.mxu0 0.0
    %141 = vmatprep.subr.mxu0 0.0
    %142 = vmatpush1.msra.mxu0 0.0
    %143 = vmatprep.subr.mxu0 0.0
    %144 = vmatpush1.msra.mxu0 0.0
    %145 = vmatprep.subr.mxu0 0.0
    %146 = vmatpush1.msra.mxu0 0.0
    %147 = vmatprep.subr.mxu0 0.0
    %148 = vmatpush1.msra.mxu0 0.0
    %149 = vmatprep.subr.mxu0 0.0
    %150 = vmatpush1.msra.mxu0 0.0
    %151 = vmatprep.subr.mxu0 0.0
    %152 = vmatpush1.msra.mxu0 0.0
    %153 = vmatprep.subr.mxu0 0.0
    %154 = vmatpush1.msra.mxu0 0.0
    %155 = vmatprep.subr.mxu0 0.0
    %156 = vmatpush1.msra.mxu0 0.0
    %157 = vmatprep.subr.mxu0 0.0
    %158 = vmatpush1.msra.mxu0 0.0
    %159 = vmatprep.subr.mxu0 0.0
    %160 = vmatpush1.msra.mxu0 0.0
    %161 = vmatprep.subr.mxu0 0.0
    %162 = vmatpush1.msra.mxu0 0.0
    %163 = vmatprep.mubr.f32.mxu0 0.0
    %164 = vmatmul.mubr.f32.gmra.mrb[0].mxu0 %v94
    %v165 = vpop.f32.mrb[0].mxu0
    %v166 = vadd.f32 0.0, %v165
    %v167 = vpop.f32.mrb[0].mxu0
    %168 = vmatprep.mubr.f32.mxu0 0.0
    %169 = vmatmul.mubr.f32.gmra.mrb[0].mxu0 %v97
    %v170 = vpop.f32.mrb[0].mxu0
    %v171 = vadd.f32 0.0, %v170
    %v172 = vpop.f32.mrb[0].mxu0
    %173 = vdwg.mxu0
    %vm174 = vcmask 261120
    %175 = vst.msk [vmem:[#allocation2] sm:$0xff] %vm174, %v166
    %176 = vst.msk [vmem:[#allocation2 + $0x8] sm:$0xff] %vm174, %v171
    // Predicated region
    $region10: #{tpu_custom_call.1} parent=1 // pred_check
      _
    $region11: #{tpu_custom_call.1} parent=1 // pred_check_branch
      %178 = sbr.rel (0) target = $region13
    $region12: #{tpu_custom_call.1} parent=1 // pred_region
      %s180 = ssub.s32 256, 256
      %181 = vsyncadd [#allocation3], %s180
      %s182 = sshll.u32 [#allocation2], 4
      %s183 = int_to_ptr.vmem [resolvable:$true] %s182
      %188 = dma.vmem_to_hbm [thread:$0]  %s183, 256, %s2, [#allocation3], 128, 128, 8
    $region13: #{tpu_custom_call.1} parent=1 // pred_fallthru
      _
    // Predicated region
    $region14: #{tpu_custom_call.1} parent=1 // pred_check
      _
    $region15: #{tpu_custom_call.1} parent=1 // pred_check_branch
      %190 = sbr.rel (0) target = $region17
    $region16: #{tpu_custom_call.1} parent=1 // pred_region
      %191 = dma.done [#allocation3], 256
    $region17: #{tpu_custom_call.1} parent=1 // pred_fallthru
      _
    %192 = vsyncpa [#allocation3], 1

</llo_original>
